<compile_context>
chip_gen: v7x
topology: tpu7x:2x2x1
jax: 0.10.0
libtpu: 0.0.40
codegen_flags: <defaults>
</compile_context>

<pallas_src>
import functools

import jax
import jax.numpy as jnp
from jax.experimental import pallas as pl
from jax.experimental.pallas import tpu as pltpu

BN_EPS = 1e-5
LANE = 128
# Single fused block handles up to this many rows; per-row VMEM cost is only
# ~(D + 2*Hp)*4 bytes ~ 1.5 KiB, so 8K rows sit well under the VMEM limit.
_MAX_SINGLE_BLOCK_ROWS = 8192
_ROW_TILE = 2048                      # rows per tile in the large-N path (multiple of 8)
_VMEM_LIMIT_BYTES = 48 * 1024 * 1024  # explicit; safe on v5e/v6e (128 MiB) and v7x (64 MiB)


def _round_up(v, m):
    return (v + m - 1) // m * m


def _fused_single_block_kernel(x_ref, w_ref, gb_ref, o_ref, *, n_rows, h_dim):
    """Fully fused fc1 + BatchNorm1d(batch stats) + ReLU for one resident block.

    x_ref:  (N, D)   f32
    w_ref:  (D, Hp)  f32  fc1.weight.T, feature axis zero-padded to lane-dense Hp
    gb_ref: (2, Hp)  f32  row 0 = bn1.weight (gamma, pad=1), row 1 = bn1.bias (beta, pad=0)
    o_ref:  (N, h_dim) f32  (narrow, unpadded output in HBM)

    fc1.bias is intentionally dropped: training-mode BN cancels it exactly.
    Centered two-pass variance (exact BatchNorm numerics) since h is resident.
    """
    h = jnp.dot(x_ref[...], w_ref[...], preferred_element_type=jnp.float32)

    inv_n = 1.0 / n_rows
    mean = jnp.sum(h, axis=0, keepdims=True) * inv_n
    c = h - mean
    var = jnp.sum(c * c, axis=0, keepdims=True) * inv_n
    inv_std = jax.lax.rsqrt(var + BN_EPS)            # EUP slot (free vs VALU)

    scale = gb_ref[0:1, :] * inv_std
    out = jnp.maximum(c * scale + gb_ref[1:2, :], 0.0)
    o_ref[...] = out[:, :h_dim]                      # narrow store: only real features


def _stats_kernel(x_ref, w_ref, gb_ref, ss_ref, stats_ref, *, n_rows, row_tile):
    """Pass 1 (sequential over row tiles): accumulate per-feature sum / sum_sq,
    finalize folded [scale; shift] on the last tile.

    x_ref:     (TN, D)  row tile (last tile ragged; rows >= n_rows masked here)
    ss_ref:    (2, Hp)  OUTPUT: row 0 = scale, row 1 = shift (written on last tile)
    stats_ref: (2, Hp)  VMEM scratch: running [sum; sum_sq]

    Note: one-pass E[x^2]-mean^2 variance (clamped >= 0).  Exact enough here
    because a centered second pass would require a third read of x from HBM.
    """
    i = pl.program_id(0)
    num_tiles = pl.num_programs(0)

    h = jnp.dot(x_ref[...], w_ref[...], preferred_element_type=jnp.float32)

    if n_rows % row_tile != 0:
        # Ragged last tile: zero the garbage rows so dividing by the true n is exact.
        rows = i * row_tile + jax.lax.broadcasted_iota(jnp.int32, (row_tile, 1), 0)
        h = jnp.where(rows < n_rows, h, 0.0)

    @pl.when(i == 0)
    def _init():
        stats_ref[...] = jnp.zeros_like(stats_ref)

    stats_ref[0:1, :] += jnp.sum(h, axis=0, keepdims=True)
    stats_ref[1:2, :] += jnp.sum(h * h, axis=0, keepdims=True)

    @pl.when(i == num_tiles - 1)
    def _finalize():
        inv_n = 1.0 / n_rows
        mean = stats_ref[0:1, :] * inv_n
        var = jnp.maximum(stats_ref[1:2, :] * inv_n - mean * mean, 0.0)
        inv_std = jax.lax.rsqrt(var + BN_EPS)
        scale = gb_ref[0:1, :] * inv_std
        ss_ref[0:1, :] = scale
        ss_ref[1:2, :] = gb_ref[1:2, :] - mean * scale


def _normalize_kernel(x_ref, w_ref, ss_ref, o_ref, *, h_dim):
    """Pass 2 (parallel over row tiles): recompute the tile matmul and apply the
    folded scale/shift + ReLU, storing only the real (unpadded) feature columns.
    Ragged last-tile rows produce don't-care values that Pallas drops on write."""
    h = jnp.dot(x_ref[...], w_ref[...], preferred_element_type=jnp.float32)
    out = jnp.maximum(h * ss_ref[0:1, :] + ss_ref[1:2, :], 0.0)
    o_ref[...] = out[:, :h_dim]


@functools.partial(
    jax.jit,
    static_argnames=("batch_size", "is_sum", "max_single_block_rows", "row_tile"))
def scale_regression_forward(x, w1_t, b1, gamma, beta, *, batch_size, is_sum=False,
                             max_single_block_rows=_MAX_SINGLE_BLOCK_ROWS,
                             row_tile=_ROW_TILE):
    """Pallas-backed ScaleRegression.forward (training-mode BatchNorm).

    x: (N, D) f32.  w1_t: (D, H) = fc1.weight.T.  b1 is accepted for API parity
    but unused: with batch-stats BN the fc1 bias cancels exactly.  NOTE: this
    cancellation does NOT hold for eval-mode (running-stats) BatchNorm.
    """
    del b1  # mathematically cancelled by the batch-mean subtraction (train-mode BN)
    n, d = x.shape
    h_dim = w1_t.shape[1]

    # Lane-dense feature axis for the in-kernel matmul/epilogue only; the HBM
    # output stays at the narrow true width h_dim (padded cols never leave VMEM).
    hp = _round_up(h_dim, LANE)
    w_p = jnp.pad(w1_t, ((0, 0), (0, hp - h_dim)))
    gamma_p = jnp.pad(gamma.reshape(1, -1), ((0, 0), (0, hp - h_dim)), constant_values=1.0)
    beta_p = jnp.pad(beta.reshape(1, -1), ((0, 0), (0, hp - h_dim)))
    gb = jnp.concatenate([gamma_p, beta_p], axis=0)  # single (2, Hp) param input

    # TODO(synk): optionally cast x / w_p to bfloat16 for the MXU (halves x HBM
    # traffic) once validated against the reference tolerances.
    if n <= max_single_block_rows:
        out = pl.pallas_call(
            functools.partial(_fused_single_block_kernel, n_rows=n, h_dim=h_dim),
            out_shape=jax.ShapeDtypeStruct((n, h_dim), jnp.float32),
            compiler_params=pltpu.CompilerParams(
                vmem_limit_bytes=_VMEM_LIMIT_BYTES),
        )(x, w_p, gb)
    else:
        tn = row_tile
        num_tiles = pl.cdiv(n, tn)

        # Pass 1: sequential stats -> folded (2, Hp) scale/shift.  Output block
        # index is constant, so it is written back exactly once at the end
        # (no spurious per-tile output writebacks as in the old two-phase grid).
        ss = pl.pallas_call(
            functools.partial(_stats_kernel, n_rows=n, row_tile=tn),
            out_shape=jax.ShapeDtypeStruct((2, hp), jnp.float32),
            grid_spec=pltpu.PrefetchScalarGridSpec(
                num_scalar_prefetch=0,
                grid=(num_tiles,),
                in_specs=[
                    pl.BlockSpec((tn, d), lambda i: (i, 0)),
                    pl.BlockSpec((d, hp), lambda i: (0, 0)),
                    pl.BlockSpec((2, hp), lambda i: (0, 0)),
                ],
                out_specs=pl.BlockSpec((2, hp), lambda i: (0, 0)),
                scratch_shapes=[pltpu.VMEM((2, hp), jnp.float32)],  # running [sum; sum_sq]
            ),
            compiler_params=pltpu.CompilerParams(
                dimension_semantics=("arbitrary",),
                vmem_limit_bytes=_VMEM_LIMIT_BYTES),
        )(x, w_p, gb)

        # Pass 2: normalize; row-tile axis is independent -> "parallel" so the
        # two TensorCores on v7x split it (no-op on v5e/v6e).
        # TODO(synk): if DMA is still exposed, bump x to pipeline_mode=pl.Buffered(3).
        out = pl.pallas_call(
            functools.partial(_normalize_kernel, h_dim=h_dim),
            out_shape=jax.ShapeDtypeStruct((n, h_dim), jnp.float32),
            grid_spec=pltpu.PrefetchScalarGridSpec(
                num_scalar_prefetch=0,
                grid=(num_tiles,),
                in_specs=[
                    pl.BlockSpec((tn, d), lambda i: (i, 0)),
                    pl.BlockSpec((d, hp), lambda i: (0, 0)),
                    pl.BlockSpec((2, hp), lambda i: (0, 0)),
                ],
                out_specs=pl.BlockSpec((tn, h_dim), lambda i: (i, 0)),
            ),
            compiler_params=pltpu.CompilerParams(
                dimension_semantics=("parallel",),
                vmem_limit_bytes=_VMEM_LIMIT_BYTES),
        )(x, w_p, ss)

    if is_sum:
        # Glue: view(batch_size, -1) -> cumsum(dim=1) -> view(-1, 1)
        # TODO(synk): cumsum left in plain JAX glue (tiny, not the hot path here).
        flat = out.reshape(batch_size, -1)
        flat = jnp.cumsum(flat, axis=1)
        return flat.reshape(-1, 1)
    return out


# ----------------------------- reference & test -----------------------------

def _reference_forward(x, w1_t, b1, gamma, beta, batch_size, is_sum):
    h = x @ w1_t + b1                      # bias included -> validates the cancellation
    mean = jnp.mean(h, axis=0, keepdims=True)
    var = jnp.mean((h - mean) ** 2, axis=0, keepdims=True)
    y = gamma * (h - mean) / jnp.sqrt(var + BN_EPS) + beta
    y = jnp.maximum(y, 0.0)
    if is_sum:
        y = jnp.cumsum(y.reshape(batch_size, -1), axis=1).reshape(-1, 1)
    return y


def _make_case(key, n, input_size, is_sum):
    hidden = 32 if is_sum else 16
    if input_size == 1:
        hidden = 1
    k = jax.random.split(key, 5)
    x = jax.random.normal(k[0], (n, input_size), jnp.float32)
    w1_t = jax.random.normal(k[1], (input_size, hidden), jnp.float32) / jnp.sqrt(input_size)
    b1 = jax.random.normal(k[2], (1, hidden), jnp.float32) / jnp.sqrt(input_size)
    gamma = 1.0 + 0.1 * jax.random.normal(k[3], (1, hidden), jnp.float32)
    beta = 0.1 * jax.random.normal(k[4], (1, hidden), jnp.float32)
    return x, w1_t, b1, gamma, beta


def _run_case(name, key, *, batch_size, n, input_size, is_sum, atol, rtol, **kw):
    x, w1_t, b1, gamma, beta = _make_case(key, n, input_size, is_sum)
    out = scale_regression_forward(
        x, w1_t, b1, gamma, beta, batch_size=batch_size, is_sum=is_sum, **kw)
    out = jax.block_until_ready(out)
    ref = _reference_forward(x, w1_t, b1, gamma, beta, batch_size, is_sum)
    assert out.shape == ref.shape, (name, out.shape, ref.shape)
    max_err = float(jnp.max(jnp.abs(out - ref)))
    assert jnp.allclose(out, ref, atol=atol, rtol=rtol), (name, max_err)


if __name__ == "__main__":
    keys = jax.random.split(jax.random.PRNGKey(0), 3)

    # 1) Small single-block fused path, is_sum=False (input_size=32 -> hidden=16).
    _run_case("small", keys[0], batch_size=2, n=8, input_size=32, is_sum=False,
              atol=5e-4, rtol=5e-4)

    # 2) Small single-block fused path, is_sum=True (hidden=32, cumsum/view glue).
    _run_case("small_sum", keys[1], batch_size=2, n=8, input_size=32, is_sum=True,
              atol=1e-3, rtol=1e-3)

    # 3) Two-pass tiled path (forced by lowering the threshold): n=1500, tile=512,
    #    3 row tiles with a ragged last tile (exercises in-kernel row masking and
    #    the ragged narrow output write).
    _run_case("tiled", keys[2], batch_size=2, n=1500, input_size=128, is_sum=False,
              atol=2e-3, rtol=2e-3, max_single_block_rows=512, row_tile=512)

    print("KERNEL_OK")
</pallas_src>

<mosaic_0001>
module attributes {stable_mosaic.version = 11 : i64} {
  func.func @_fused_single_block_kernel(%arg0: memref<8x32xf32, #tpu.memory_space<vmem>>, %arg1: memref<32x128xf32, #tpu.memory_space<vmem>>, %arg2: memref<2x128xf32, #tpu.memory_space<vmem>>, %arg3: memref<8x16xf32, #tpu.memory_space<vmem>>) attributes {dimension_semantics = [], scalar_prefetch = 0 : i64, scratch_operands = 0 : i64, tpu.core_type = #tpu.core_type<tc>} {
    %c0 = arith.constant 0 : index
    %c0_0 = arith.constant 0 : index
    %0 = vector.load %arg0[%c0, %c0_0] : memref<8x32xf32, #tpu.memory_space<vmem>>, vector<8x32xf32>
    %c0_1 = arith.constant 0 : index
    %c0_2 = arith.constant 0 : index
    %1 = vector.load %arg1[%c0_1, %c0_2] : memref<32x128xf32, #tpu.memory_space<vmem>>, vector<32x128xf32>
    %cst = arith.constant dense<0.000000e+00> : vector<8x128xf32>
    %2 = tpu.matmul %0, %1, %cst {dimension_numbers = #tpu.dot_dimension_numbers<[1], [0], [0], [1], [0, 0, 1, 1], [], []>} : vector<8x32xf32>, vector<32x128xf32>, vector<8x128xf32> -> vector<8x128xf32>
    %cst_3 = arith.constant dense<0.000000e+00> : vector<128xf32>
    %3 = vector.multi_reduction <add>, %2, %cst_3 [0] : vector<8x128xf32> to vector<128xf32>
    %4 = vector.shape_cast %3 : vector<128xf32> to vector<1x128xf32>
    %cst_4 = arith.constant 1.250000e-01 : f32
    %5 = vector.broadcast %cst_4 : f32 to vector<1x128xf32>
    %6 = arith.mulf %4, %5 : vector<1x128xf32>
    %7 = vector.broadcast %6 : vector<1x128xf32> to vector<8x128xf32>
    %8 = arith.subf %2, %7 : vector<8x128xf32>
    %9 = arith.mulf %8, %8 : vector<8x128xf32>
    %cst_5 = arith.constant dense<0.000000e+00> : vector<128xf32>
    %10 = vector.multi_reduction <add>, %9, %cst_5 [0] : vector<8x128xf32> to vector<128xf32>
    %11 = vector.shape_cast %10 : vector<128xf32> to vector<1x128xf32>
    %cst_6 = arith.constant 1.250000e-01 : f32
    %12 = vector.broadcast %cst_6 : f32 to vector<1x128xf32>
    %13 = arith.mulf %11, %12 : vector<1x128xf32>
    %cst_7 = arith.constant 9.99999974E-6 : f32
    %14 = vector.broadcast %cst_7 : f32 to vector<1x128xf32>
    %15 = arith.addf %13, %14 : vector<1x128xf32>
    %16 = math.rsqrt %15 : vector<1x128xf32>
    %c0_8 = arith.constant 0 : index
    %c0_9 = arith.constant 0 : index
    %17 = vector.load %arg2[%c0_8, %c0_9] : memref<2x128xf32, #tpu.memory_space<vmem>>, vector<1x128xf32>
    %18 = arith.mulf %17, %16 : vector<1x128xf32>
    %19 = vector.broadcast %18 : vector<1x128xf32> to vector<8x128xf32>
    %20 = arith.mulf %8, %19 : vector<8x128xf32>
    %c1 = arith.constant 1 : index
    %c0_10 = arith.constant 0 : index
    %21 = vector.load %arg2[%c1, %c0_10] : memref<2x128xf32, #tpu.memory_space<vmem>>, vector<1x128xf32>
    %22 = vector.broadcast %21 : vector<1x128xf32> to vector<8x128xf32>
    %23 = arith.addf %20, %22 : vector<8x128xf32>
    %cst_11 = arith.constant 0.000000e+00 : f32
    %24 = vector.broadcast %cst_11 : f32 to vector<8x128xf32>
    %25 = arith.maximumf %23, %24 : vector<8x128xf32>
    %26 = vector.extract_strided_slice %25 {offsets = [0, 0], sizes = [8, 16], strides = [1, 1]} : vector<8x128xf32> to vector<8x16xf32>
    %c0_12 = arith.constant 0 : index
    %c0_13 = arith.constant 0 : index
    %27 = vector.load %arg3[%c0_12, %c0_13] : memref<8x16xf32, #tpu.memory_space<vmem>>, vector<8x16xf32>
    tpu.vector_store %arg3[%c0_12, %c0_13], %26 {strides = array<i32>} : memref<8x16xf32, #tpu.memory_space<vmem>>, vector<8x16xf32>,
    return
  }
}

</mosaic_0001>

<llo_original>
// kernel: scale_regression_forward.1
$region0: #{scale_regression_forward.1}
  #allocation0 [shape = 'u32[]', space=smem, size = 0x4, offset = 0x4, fixed_abs, tag = 'smem constant byte address 0x4 - core index']
  #allocation1 [shape = 'u32[144,128]{1,0:T(1,128)}', space=vmem, size = 0x12000, scoped, tag = 'internal scratch']
  %s0 = inlined_call_operand.vmem [shape: f32[8,32], index: 0, kind: input, shape index: {}]
  %s1 = inlined_call_operand.vmem [shape: f32[32,128], index: 1, kind: input, shape index: {}]
  %s2 = inlined_call_operand.vmem [shape: f32[2,128], index: 2, kind: input, shape index: {}]
  %s3 = inlined_call_operand.hbm [shape: f32[8,16], index: 3, kind: output, shape index: {}]
  %s4 = sld [smem:[#allocation0]]
  $region22: #{scale_regression_forward.1} parent=0
    _
  %s6 = ssub.s32 1, %s4
  %s7 = scalar_select 0, %s6, %s4
  $region1: #{scale_regression_forward.1} parent=0
    #allocation2 [shape = 'u8[4096]{0}', space=vmem, size = 0x1000, scoped, tag = 'output window, operand 0, single buffered']
    #allocation3 [shape = 's32[1]{0}', space=sflag, size = 0x4, scoped, tag = 'scoped memory for scale_regression_forward.1']
    %8 = vsyncpa [#allocation3], 0
    // Predicated region
    $region2: #{scale_regression_forward.1} parent=1 // pred_check
      _
    $region3: #{scale_regression_forward.1} parent=1 // pred_check_branch
      %10 = sbr.rel (0) target = $region5
    $region4: #{scale_regression_forward.1} parent=1 // pred_region
      _
    $region5: #{scale_regression_forward.1} parent=1 // pred_fallthru
      _
    // Predicated region
    $region6: #{scale_regression_forward.1} parent=1 // pred_check
      _
    $region7: #{scale_regression_forward.1} parent=1 // pred_check_branch
      %12 = sbr.rel (0) target = $region9
    $region8: #{scale_regression_forward.1} parent=1 // pred_region
      _
    $region9: #{scale_regression_forward.1} parent=1 // pred_fallthru
      _
    // Predicated region
    $region10: #{scale_regression_forward.1} parent=1 // pred_check
      _
    $region11: #{scale_regression_forward.1} parent=1 // pred_check_branch
      %14 = sbr.rel (0) target = $region13
    $region12: #{scale_regression_forward.1} parent=1 // pred_region
      _
    $region13: #{scale_regression_forward.1} parent=1 // pred_fallthru
      _
    %v15 = vld [vmem:[%s0] sm:$0xff]
    %v16 = vld [vmem:[%s1] sm:$0xff]
    %v17 = vld [vmem:[%s1 + $0x8] sm:$0xff]
    %v18 = vld [vmem:[%s1 + $0x10] sm:$0xff]
    %v19 = vld [vmem:[%s1 + $0x18] sm:$0xff]
    %vm20 = vcmask 261120
    %v22 = vsel %vm20, %v15, 0
    %24 = vmatprep.subr.mxu0 0.0
    %25 = vmatpush1.msra.mxu0 %v16
    %26 = vmatprep.subr.mxu0 0.0
    %27 = vmatpush1.msra.mxu0 %v17
    %28 = vmatprep.subr.mxu0 0.0
    %29 = vmatpush1.msra.mxu0 %v18
    %30 = vmatprep.subr.mxu0 0.0
    %31 = vmatpush1.msra.mxu0 %v19
    %32 = vmatprep.subr.mxu0 0.0
    %33 = vmatpush1.msra.mxu0 0.0
    %34 = vmatprep.subr.mxu0 0.0
    %35 = vmatpush1.msra.mxu0 0.0
    %36 = vmatprep.subr.mxu0 0.0
    %37 = vmatpush1.msra.mxu0 0.0
    %38 = vmatprep.subr.mxu0 0.0
    %39 = vmatpush1.msra.mxu0 0.0
    %40 = vmatprep.subr.mxu0 0.0
    %41 = vmatpush1.msra.mxu0 0.0
    %42 = vmatprep.subr.mxu0 0.0
    %43 = vmatpush1.msra.mxu0 0.0
    %44 = vmatprep.subr.mxu0 0.0
    %45 = vmatpush1.msra.mxu0 0.0
    %46 = vmatprep.subr.mxu0 0.0
    %47 = vmatpush1.msra.mxu0 0.0
    %48 = vmatprep.subr.mxu0 0.0
    %49 = vmatpush1.msra.mxu0 0.0
    %50 = vmatprep.subr.mxu0 0.0
    %51 = vmatpush1.msra.mxu0 0.0
    %52 = vmatprep.subr.mxu0 0.0
    %53 = vmatpush1.msra.mxu0 0.0
    %54 = vmatprep.subr.mxu0 0.0
    %55 = vmatpush1.msra.mxu0 0.0
    %56 = vmatprep.subr.mxu0 0.0
    %57 = vmatpush1.msra.mxu0 0.0
    %58 = vmatprep.subr.mxu0 0.0
    %59 = vmatpush1.msra.mxu0 0.0
    %60 = vmatprep.subr.mxu0 0.0
    %61 = vmatpush1.msra.mxu0 0.0
    %62 = vmatprep.subr.mxu0 0.0
    %63 = vmatpush1.msra.mxu0 0.0
    %64 = vmatprep.subr.mxu0 0.0
    %65 = vmatpush1.msra.mxu0 0.0
    %66 = vmatprep.subr.mxu0 0.0
    %67 = vmatpush1.msra.mxu0 0.0
    %68 = vmatprep.subr.mxu0 0.0
    %69 = vmatpush1.msra.mxu0 0.0
    %70 = vmatprep.subr.mxu0 0.0
    %71 = vmatpush1.msra.mxu0 0.0
    %72 = vmatprep.subr.mxu0 0.0
    %73 = vmatpush1.msra.mxu0 0.0
    %74 = vmatprep.subr.mxu0 0.0
    %75 = vmatpush1.msra.mxu0 0.0
    %76 = vmatprep.subr.mxu0 0.0
    %77 = vmatpush1.msra.mxu0 0.0
    %78 = vmatprep.subr.mxu0 0.0
    %79 = vmatpush1.msra.mxu0 0.0
    %80 = vmatprep.subr.mxu0 0.0
    %81 = vmatpush1.msra.mxu0 0.0
    %82 = vmatprep.subr.mxu0 0.0
    %83 = vmatpush1.msra.mxu0 0.0
    %84 = vmatprep.subr.mxu0 0.0
    %85 = vmatpush1.msra.mxu0 0.0
    %86 = vmatprep.subr.mxu0 0.0
    %87 = vmatpush1.msra.mxu0 0.0
    %88 = vmatprep.mubr.f32.mxu0 0.0
    %89 = vmatmul.mubr.f32.gmra.mrb[0].mxu0 %v22
    %v90 = vpop.f32.mrb[0].mxu0
    %v91 = vadd.f32 0.0, %v90
    %v92 = vpop.f32.mrb[0].mxu0
    %93 = vdwg.mxu0
    %v94 = vrot.slane %v91, 4
    %v95 = vadd.f32 %v91, %v94
    %v96 = vrot.slane %v95, 2
    %v97 = vadd.f32 %v95, %v96
    %v98 = vrot.slane %v97, 1
    %v99 = vadd.f32 %v97, %v98
    %v100 = vmul.f32 %v99, 0.125
    %v101 = vsub.f32 %v91, %v100
    %v102 = vmul.f32 %v101, %v101
    %v103 = vrot.slane %v102, 4
    %v104 = vadd.f32 %v102, %v103
    %v105 = vrot.slane %v104, 2
    %v106 = vadd.f32 %v104, %v105
    %v107 = vrot.slane %v106, 1
    %v108 = vadd.f32 %v106, %v107
    %v109 = vmul.f32 %v108, 0.125
    %v110 = vadd.f32 %v109, 1e-05
    %v111 = vrsqrt.pop %v110
    %v112 = vld [vmem:[%s2] sm:$0x1]
    %v113 = vmul.f32 %v112, %v111
    %v114 = vlaneseq
    %v115 = vshrl.u32 %v114, 7
    %v116 = vsub.s32 0, %v115
    %v117 = vrot.slane %v113, %v116
    %v118 = vmul.f32 %v101, %v117
    %v119 = vld [vmem:[%s2 + $0x1] sm:$0x1]
    %v120 = vlaneseq
    %v121 = vshrl.u32 %v120, 7
    %v122 = vsub.s32 0, %v121
    %v123 = vrot.slane %v119, %v122
    %v124 = vadd.f32 %v118, %v123
    %v125 = vmax.f32 %v124, 0.0
    %vm126 = vcmask 130048
    %127 = vst.msk [vmem:[#allocation2] sm:$0xff] %vm126, %v125
    // Predicated region
    $region14: #{scale_regression_forward.1} parent=1 // pred_check
      _
    $region15: #{scale_regression_forward.1} parent=1 // pred_check_branch
      %129 = sbr.rel (0) target = $region17
    $region16: #{scale_regression_forward.1} parent=1 // pred_region
      %s131 = ssub.s32 128, 128
      %132 = vsyncadd [#allocation3], %s131
      %s134 = sshll.u32 [#allocation2], 4
      %s135 = int_to_ptr.vmem [resolvable:$true] %s134
      %137 = dma.vmem_to_hbm [thread:$0]  %s135, 128, %s3, [#allocation3]
    $region17: #{scale_regression_forward.1} parent=1 // pred_fallthru
      _
    // Predicated region
    $region18: #{scale_regression_forward.1} parent=1 // pred_check
      _
    $region19: #{scale_regression_forward.1} parent=1 // pred_check_branch
      %139 = sbr.rel (0) target = $region21
    $region20: #{scale_regression_forward.1} parent=1 // pred_region
      %140 = dma.done [#allocation3], 128
    $region21: #{scale_regression_forward.1} parent=1 // pred_fallthru
      _
    %141 = vsyncpa [#allocation3], 1

</llo_original>
